<compile_context>
chip_gen: v5e
topology: v5e:2x2
jax: 0.10.0
libtpu: 0.0.40
codegen_flags: <defaults>
</compile_context>

<pallas_src>
import functools

import jax
import jax.numpy as jnp
from jax.experimental import pallas as pl
from jax.experimental.pallas import tpu as pltpu


# ----------------------------- corr_layer (1x1 conv) -------------------------

def _corr_kernel(w_ref, x_ref, o_ref):
    # w: (J, C) f32, x: (C, THW) f32.  Cast to bf16 in VMEM right before the
    # MXU dot (halves MXU work, no extra HBM round trip), accumulate in f32,
    # store bf16 (corr is written once, re-read every refinement iteration).
    w = w_ref[...].astype(jnp.bfloat16)
    x = x_ref[...].astype(jnp.bfloat16)
    o_ref[...] = jnp.dot(w, x, preferred_element_type=jnp.float32).astype(o_ref.dtype)


def _pick_corr_tile(hw_pad, batch):
    """Lane-dense spatial tile (always a multiple of 128 dividing hw_pad)."""
    if hw_pad <= 4096:
        thw = hw_pad
    else:
        thw = 128
        t = 128
        while t <= 2048:
            if hw_pad % t == 0:
                thw = t
            t += 128
    # v7x megacore: keep >=2 parallel grid steps even when batch == 1.
    if batch == 1 and thw == hw_pad and hw_pad % 256 == 0:
        thw = hw_pad // 2
    return thw


def pallas_corr1x1(feat_bchw, w_jc):
    """Bias-free 1x1 Conv2d.  feat: (B, C, H, W) f32, w: (J, C) f32
    -> corr: (B, J, H, W) bf16, written lane-dense in (B, J, H*W) layout."""
    B, C, H, W = feat_bchw.shape
    J = w_jc.shape[0]
    HW = H * W
    x = feat_bchw.reshape(B, C, HW)                     # stays f32 (HBM-read bound)

    # Guard lane density: pad H*W up to a multiple of 128 so stores stay unmasked.
    HW_pad = ((HW + 127) // 128) * 128
    if HW_pad != HW:
        x = jnp.pad(x, ((0, 0), (0, 0), (0, HW_pad - HW)))

    thw = _pick_corr_tile(HW_pad, B)
    grid = (B, HW_pad // thw)

    corr = pl.pallas_call(
        _corr_kernel,
        out_shape=jax.ShapeDtypeStruct((B, J, HW_pad), jnp.bfloat16),
        grid=grid,
        in_specs=[
            pl.BlockSpec((J, C), lambda b, t: (0, 0)),
            pl.BlockSpec((None, C, thw), lambda b, t: (b, 0, t)),
        ],
        out_specs=pl.BlockSpec((None, J, thw), lambda b, t: (b, 0, t)),
        compiler_params=pltpu.CompilerParams(
            dimension_semantics=("parallel", "parallel"),
            vmem_limit_bytes=32 * 1024 * 1024,
        ),
    )(w_jc, x)

    if HW_pad != HW:
        corr = corr[:, :, :HW]
    return corr.reshape(B, J, H, W)


# --------------------------- lookup (bilinear windows) -----------------------

def _lookup_kernel(corr_ref, x0_ref, y0_ref, fx_ref, fy_ref, o_ref, *, radius):
    # corr: (J, H, W) bf16; x0/y0: (J, 1) int32 = floor(coords); fx/fy: (J, 1)
    # fractional parts; o: (J, K, K) f32 with K = 2r+1 and area index i*K + k
    # (i = offset added to x, k = offset added to y), matching REFIT.lookup.
    J, H, W = corr_ref.shape
    K = 2 * radius + 1

    plane = corr_ref[...].astype(jnp.float32)                       # (J, H, W)
    x0 = x0_ref[...].reshape(J, 1, 1)
    y0 = y0_ref[...].reshape(J, 1, 1)
    fx = fx_ref[...].reshape(J, 1, 1)
    fy = fy_ref[...].reshape(J, 1, 1)

    # One-hot bilinear weights via iota-compare (VPU); taps that fall outside
    # [0, W-1] / [0, H-1] simply match no lane -> zero padding for free.
    lane_x = jax.lax.broadcasted_iota(jnp.int32, (J, K, W), 2)
    off_i = jax.lax.broadcasted_iota(jnp.int32, (J, K, W), 1) - radius
    xb = x0 + off_i
    xw = (jnp.where(lane_x == xb, 1.0 - fx, 0.0)
          + jnp.where(lane_x == xb + 1, fx, 0.0))                    # (J, K, W)

    lane_y = jax.lax.broadcasted_iota(jnp.int32, (J, K, H), 2)
    off_k = jax.lax.broadcasted_iota(jnp.int32, (J, K, H), 1) - radius
    yb = y0 + off_k
    yw = (jnp.where(lane_y == yb, 1.0 - fy, 0.0)
          + jnp.where(lane_y == yb + 1, fy, 0.0))                    # (J, K, H)

    # s[j, k, x] = sum_y yw[j, k, y] * plane[j, y, x]
    s = jnp.sum(yw[:, :, :, None] * plane[:, None, :, :], axis=2)    # (J, K, W)
    # o[j, i, k] = sum_x xw[j, i, x] * s[j, k, x]
    o = jnp.sum(xw[:, :, None, :] * s[:, None, :, :], axis=3)        # (J, K, K)
    o_ref[...] = o.astype(o_ref.dtype)


def pallas_lookup(corr_bjhw, coords_xy, radius):
    """REFIT.lookup: bilinear-sample a (2r+1)^2 window of each point's corr
    channel.  corr: (B, J, H, W) (bf16 ok), coords: (B, J, 2) (x, y)."""
    B, J, H, W = corr_bjhw.shape
    K = 2 * radius + 1

    xf = coords_xy[..., 0].astype(jnp.float32)
    yf = coords_xy[..., 1].astype(jnp.float32)
    x0 = jnp.floor(xf)
    y0 = jnp.floor(yf)
    x0i = x0.astype(jnp.int32)[..., None]                            # (B, J, 1)
    y0i = y0.astype(jnp.int32)[..., None]
    fx = (xf - x0)[..., None]
    fy = (yf - y0)[..., None]

    out = pl.pallas_call(
        functools.partial(_lookup_kernel, radius=radius),
        out_shape=jax.ShapeDtypeStruct((B, J, K, K), jnp.float32),
        grid=(B,),
        in_specs=[
            pl.BlockSpec((None, J, H, W), lambda b: (b, 0, 0, 0)),
            pl.BlockSpec((None, J, 1), lambda b: (b, 0, 0)),
            pl.BlockSpec((None, J, 1), lambda b: (b, 0, 0)),
            pl.BlockSpec((None, J, 1), lambda b: (b, 0, 0)),
            pl.BlockSpec((None, J, 1), lambda b: (b, 0, 0)),
        ],
        out_specs=pl.BlockSpec((None, J, K, K), lambda b: (b, 0, 0, 0)),
        compiler_params=pltpu.CompilerParams(
            dimension_semantics=("parallel",),
        ),
    )(corr_bjhw, x0i, y0i, fx, fy)
    return out.reshape(B, J, K * K)


# ------------------ init_layer + flow_layer + local_layer (fused) ------------

def _init_flow_local_kernel(z_ref, wi_ref, bi_ref, x_ref, wf_ref, bf_ref,
                            wl_ref, bl_ref, h_ref, o_ref):
    # init_layer + tanh
    h = jnp.dot(z_ref[...], wi_ref[...], preferred_element_type=jnp.float32) + bi_ref[...]
    h_ref[...] = jnp.tanh(h).astype(h_ref.dtype)
    # flow_layer (block-diagonal MultiLinear) -> local_layer, all on the MXU;
    # the (B, J*F) intermediate never leaves VMEM/vregs.  Dropout1d is identity
    # in eval, so no mask input / multiply.
    flow = jnp.dot(x_ref[...], wf_ref[...], preferred_element_type=jnp.float32) + bf_ref[...]
    out = jnp.dot(flow, wl_ref[...], preferred_element_type=jnp.float32) + bl_ref[...]
    o_ref[...] = out.astype(o_ref.dtype)


def _init_flow_local_masked_kernel(z_ref, wi_ref, bi_ref, x_ref, wf_ref, bf_ref,
                                   m_ref, wl_ref, bl_ref, h_ref, o_ref):
    h = jnp.dot(z_ref[...], wi_ref[...], preferred_element_type=jnp.float32) + bi_ref[...]
    h_ref[...] = jnp.tanh(h).astype(h_ref.dtype)
    flow = (jnp.dot(x_ref[...], wf_ref[...], preferred_element_type=jnp.float32)
            + bf_ref[...]) * m_ref[...]
    out = jnp.dot(flow, wl_ref[...], preferred_element_type=jnp.float32) + bl_ref[...]
    o_ref[...] = out.astype(o_ref.dtype)


def make_block_diag_flow_weight(flow_w_jaf):
    """Precompute (at parameter-load time) the block-diagonal MultiLinear weight
    (J*A, J*F); out[b, (j, f)] = sum_a loc[b, j, a] * flow_w[j, a, f]."""
    J, A, F = flow_w_jaf.shape
    eye_j = jnp.eye(J, dtype=flow_w_jaf.dtype)
    return (eye_j[:, None, :, None] * flow_w_jaf[:, :, None, :]).reshape(J * A, J * F)


def pallas_init_flow_local(z, init_w, init_b, loc_bja, flow_w_big, flow_b,
                           local_w, local_b, masks=None):
    """One fused full-block pallas_call producing (h, loc) -- both pieces are
    launch-overhead bound, so merging them saves a launch + pipeline prologue."""
    B = z.shape[0]
    N_h = init_w.shape[1]
    JA, JF = flow_w_big.shape
    N_o = local_w.shape[1]

    x2d = loc_bja.reshape(B, JA)
    bi = init_b.reshape(1, N_h)
    bf = flow_b.reshape(1, JF)
    bl = local_b.reshape(1, N_o)

    out_shape = (jax.ShapeDtypeStruct((B, N_h), jnp.float32),
                 jax.ShapeDtypeStruct((B, N_o), jnp.float32))

    if masks is None:
        return pl.pallas_call(_init_flow_local_kernel, out_shape=out_shape)(
            z, init_w, bi, x2d, flow_w_big, bf, local_w, bl)
    m2d = masks.reshape(B, JF).astype(jnp.float32)
    return pl.pallas_call(_init_flow_local_masked_kernel, out_shape=out_shape)(
        z, init_w, bi, x2d, flow_w_big, bf, m2d, local_w, bl)


# ------------------------------ JAX glue -------------------------------------

def bbox_est(center, scale, img_focal, img_center):
    cx, cy = center[:, 0], center[:, 1]
    img_cx, img_cy = img_center[:, 0], img_center[:, 1]
    b = scale * 200.0
    b0 = (cx - img_cx) / img_focal * 2.8
    b1 = (cy - img_cy) / img_focal * 2.8
    b2 = (b - 0.24 * img_focal) / (0.06 * img_focal)
    return jnp.stack([b0, b1, b2], axis=-1)


def refit_forward(params, feature, z, center, scale, img_focal, img_center, p2d,
                  masks=None):
    B = z.shape[0]
    hidden = params["hidden_dim"]

    bbox_info = bbox_est(center, scale, img_focal, img_center)

    # corr_layer (corr_layer=0 default -> single bias-free 1x1 conv), NCHW input
    corr = pallas_corr1x1(feature, params["corr_w"])                 # (B, J, H, W) bf16

    # one lookup -> flow_layer -> local_layer step of the refinement loop
    coords = p2d / 4.0
    loc_win = pallas_lookup(corr, coords, params["radius"])          # (B, J, area) f32

    h, loc = pallas_init_flow_local(
        z, params["init_w"], params["init_b"], loc_win, params["flow_w_big"],
        params["flow_b"], params["local_w"], params["local_b"], masks=masks)
    h = h.reshape(B, 26, hidden)
    hpose, hshape, hcam = h[:, :24], h[:, 24], h[:, 25]
    loc = jnp.concatenate([loc, bbox_info], axis=-1)

    return {"h": h, "hpose": hpose, "hshape": hshape, "hcam": hcam,
            "corr": corr, "loc_win": loc_win, "loc": loc, "bbox_info": bbox_info}


# ----------------------- pure-JAX reference (for checks) ---------------------

def _bilinear_sample_zero(img, xs, ys):
    """grid_sample-style bilinear sampling, zero padding, align_corners=True."""
    H, W = img.shape
    x0 = jnp.floor(xs)
    y0 = jnp.floor(ys)
    x1, y1 = x0 + 1.0, y0 + 1.0
    wx1, wy1 = xs - x0, ys - y0
    wx0, wy0 = 1.0 - wx1, 1.0 - wy1

    def get(ix, iy):
        valid = (ix >= 0) & (ix <= W - 1) & (iy >= 0) & (iy <= H - 1)
        ixc = jnp.clip(ix, 0, W - 1).astype(jnp.int32)
        iyc = jnp.clip(iy, 0, H - 1).astype(jnp.int32)
        return jnp.where(valid, img[iyc, ixc], 0.0)

    return (get(x0, y0) * wx0 * wy0 + get(x1, y0) * wx1 * wy0
            + get(x0, y1) * wx0 * wy1 + get(x1, y1) * wx1 * wy1)


def lookup_ref(corr_bjhw, coords_xy, radius):
    B, J, H, W = corr_bjhw.shape
    r = radius
    d = jnp.linspace(-r, r, 2 * r + 1)
    # Matches torch: the offset added to x varies along the first window axis,
    # the offset added to y along the second (dx == dy linspace).
    off0, off1 = jnp.meshgrid(d, d, indexing="ij")
    win_x = coords_xy[:, :, None, None, 0] + off0[None, None]
    win_y = coords_xy[:, :, None, None, 1] + off1[None, None]
    samp = jax.vmap(jax.vmap(_bilinear_sample_zero))(corr_bjhw, win_x, win_y)
    return samp.reshape(B, J, -1)


# -------------------------------- main ---------------------------------------

if __name__ == "__main__":
    key = jax.random.PRNGKey(0)
    B, H, W = 2, 16, 16
    f_dim, z_dim = 64, 64          # (hrnet_w32 would be 480/256; scaled down)
    hidden_dim = 32
    npts, point_dim = 8, 1         # number of SSM marker points (scaled down)
    radius, flow_dim, local_dim = 1, 5, 64
    area = (2 * radius + 1) ** 2
    crop_size = 64                 # feature map is crop_size / 4

    ks = jax.random.split(key, 12)
    flow_w = 0.10 * jax.random.normal(ks[3], (npts, area * point_dim, flow_dim), jnp.float32)
    params = {
        "hidden_dim": hidden_dim, "np": npts, "flow_dim": flow_dim, "radius": radius,
        "init_w": 0.02 * jax.random.normal(ks[0], (z_dim, 26 * hidden_dim), jnp.float32),
        "init_b": 0.01 * jax.random.normal(ks[1], (26 * hidden_dim,), jnp.float32),
        # conv weight stored (out_channels, in_channels), same as torch Conv2d
        "corr_w": 0.05 * jax.random.normal(ks[2], (npts * point_dim, f_dim), jnp.float32),
        "flow_w": flow_w,
        "flow_w_big": make_block_diag_flow_weight(flow_w),  # parameter-load-time precompute
        "flow_b": 0.01 * jax.random.normal(ks[4], (npts, flow_dim), jnp.float32),
        "local_w": 0.05 * jax.random.normal(ks[5], (npts * flow_dim, local_dim), jnp.float32),
        "local_b": 0.01 * jax.random.normal(ks[6], (local_dim,), jnp.float32),
    }

    feature = jax.random.normal(ks[7], (B, f_dim, H, W), jnp.float32)   # backbone feature (NCHW)
    z = jax.random.normal(ks[8], (B, z_dim), jnp.float32)               # backbone global feature
    center = 32.0 + 4.0 * jax.random.normal(ks[9], (B, 2), jnp.float32)
    scale = 0.3 + 0.05 * jax.random.uniform(ks[10], (B,), jnp.float32)
    img_focal = jnp.full((B,), 500.0, jnp.float32)
    img_center = jnp.tile(jnp.array([[32.0, 32.0]], jnp.float32), (B, 1))
    p2d = crop_size * jax.random.uniform(ks[11], (B, npts, 2), jnp.float32)  # stand-in projected points

    out = refit_forward(params, feature, z, center, scale, img_focal, img_center, p2d)
    jax.block_until_ready(out)

    # --- pure-JAX reference checks ---
    h_ref = jnp.tanh(jnp.dot(z, params["init_w"]) + params["init_b"]).reshape(B, 26, hidden_dim)
    assert jnp.allclose(out["h"], h_ref, atol=2e-3), "init_layer mismatch"

    # corr kernel casts to bf16 on the MXU and stores bf16; reference matches that.
    feat_bf = feature.astype(jnp.bfloat16).astype(jnp.float32)
    w_bf = params["corr_w"].astype(jnp.bfloat16).astype(jnp.float32)
    corr_ref = jnp.einsum("bchw,jc->bjhw", feat_bf, w_bf, precision="highest")
    assert jnp.allclose(out["corr"].astype(jnp.float32), corr_ref,
                        atol=1e-2, rtol=1e-2), "corr_layer mismatch"

    # lookup + flow/local checks use the kernel's own (bf16) corr so the bilinear
    # and matmul math is compared apples-to-apples.
    corr_f32 = out["corr"].astype(jnp.float32)
    loc0_ref = lookup_ref(corr_f32, p2d / 4.0, radius)
    assert jnp.allclose(out["loc_win"], loc0_ref, atol=1e-3), "lookup mismatch"

    loc1_ref = jnp.einsum("bja,jaf->bjf", loc0_ref, params["flow_w"],
                          precision="highest") + params["flow_b"][None]
    loc2_ref = jnp.dot(loc1_ref.reshape(B, -1), params["local_w"],
                       precision="highest") + params["local_b"]
    loc_ref = jnp.concatenate(
        [loc2_ref, bbox_est(center, scale, img_focal, img_center)], axis=-1)
    assert jnp.allclose(out["loc"], loc_ref, atol=3e-3), "flow/local layer mismatch"

    print("KERNEL_OK")
</pallas_src>

<mosaic_0001>
module attributes {stable_mosaic.version = 11 : i64} {
  func.func @_corr_kernel(%arg0: i32, %arg1: i32, %arg2: memref<8x64xf32, #tpu.memory_space<vmem>>, %arg3: memref<1x64x256xf32, #tpu.memory_space<vmem>>, %arg4: memref<1x8x256xbf16, #tpu.memory_space<vmem>>) attributes {dimension_semantics = [#tpu.dimension_semantics<parallel>, #tpu.dimension_semantics<parallel>], iteration_bounds = array<i64: 2, 1>, scalar_prefetch = 0 : i64, scratch_operands = 0 : i64, tpu.core_type = #tpu.core_type<tc>, window_params = [{pipeline_mode = #tpu.pipeline_mode<synchronous>, transform_indices = @transform_0, window_bounds = array<i64: 8, 64>}, {transform_indices = @transform_1, window_bounds = array<i64: 1, 64, 256>}, {transform_indices = @transform_2, window_bounds = array<i64: 1, 8, 256>}]} {
    %c0 = arith.constant 0 : index
    %c0_0 = arith.constant 0 : index
    %0 = vector.load %arg2[%c0, %c0_0] : memref<8x64xf32, #tpu.memory_space<vmem>>, vector<8x64xf32>
    %1 = arith.truncf %0 : vector<8x64xf32> to vector<8x64xbf16>
    %c0_1 = arith.constant 0 : index
    %c0_2 = arith.constant 0 : index
    %c0_3 = arith.constant 0 : index
    %2 = vector.load %arg3[%c0_1, %c0_2, %c0_3] : memref<1x64x256xf32, #tpu.memory_space<vmem>>, vector<1x64x256xf32>
    %3 = vector.shape_cast %2 : vector<1x64x256xf32> to vector<64x256xf32>
    %4 = arith.truncf %3 : vector<64x256xf32> to vector<64x256xbf16>
    %cst = arith.constant dense<0.000000e+00> : vector<8x256xf32>
    %5 = tpu.matmul %1, %4, %cst {dimension_numbers = #tpu.dot_dimension_numbers<[1], [0], [0], [1], [0, 0, 1, 1], [], []>} : vector<8x64xbf16>, vector<64x256xbf16>, vector<8x256xf32> -> vector<8x256xf32>
    %6 = arith.truncf %5 : vector<8x256xf32> to vector<8x256xbf16>
    %c0_4 = arith.constant 0 : index
    %c0_5 = arith.constant 0 : index
    %c0_6 = arith.constant 0 : index
    %7 = vector.load %arg4[%c0_4, %c0_5, %c0_6] : memref<1x8x256xbf16, #tpu.memory_space<vmem>>, vector<1x8x256xbf16>
    %8 = vector.shape_cast %7 : vector<1x8x256xbf16> to vector<8x256xbf16>
    %9 = vector.shape_cast %6 : vector<8x256xbf16> to vector<1x8x256xbf16>
    tpu.vector_store %arg4[%c0_4, %c0_5, %c0_6], %9 {strides = array<i32>} : memref<1x8x256xbf16, #tpu.memory_space<vmem>>, vector<1x8x256xbf16>,
    return
  }
  func.func @transform_0(%arg0: i32, %arg1: i32) -> (i32, i32) {
    %c0_i32 = arith.constant 0 : i32
    %c0_i32_0 = arith.constant 0 : i32
    %c0_i32_1 = arith.constant 0 : i32
    return %c0_i32, %c0_i32_0 : i32, i32
  }
  func.func @transform_1(%arg0: i32, %arg1: i32) -> (i32, i32, i32) {
    %c0_i32 = arith.constant 0 : i32
    %c0_i32_0 = arith.constant 0 : i32
    return %arg0, %c0_i32, %arg1 : i32, i32, i32
  }
  func.func @transform_2(%arg0: i32, %arg1: i32) -> (i32, i32, i32) {
    %c0_i32 = arith.constant 0 : i32
    %c0_i32_0 = arith.constant 0 : i32
    return %arg0, %c0_i32, %arg1 : i32, i32, i32
  }
}

</mosaic_0001>

<llo_original>
// kernel: tpu_custom_call.1
$region0: #{tpu_custom_call.1}
  #allocation0 [shape = 'u32[]', space=smem, size = 0x4, offset = 0x4, fixed_abs, tag = 'smem constant byte address 0x4 - core index']
  #allocation1 [shape = 'u32[72,128]{1,0:T(1,128)}', space=vmem, size = 0x9000, scoped, tag = 'internal scratch']
  %s0 = inlined_call_operand.hbm [shape: f32[8,64], index: 0, kind: input, shape index: {}]
  %s1 = inlined_call_operand.hbm [shape: f32[2,64,256], index: 1, kind: input, shape index: {}]
  %s2 = inlined_call_operand.hbm [shape: bf16[2,8,256], index: 2, kind: output, shape index: {}]
  %s3 = sld [smem:[#allocation0]]
  $region49: #{tpu_custom_call.1} parent=0
    _
  %s5 = ssub.s32 1, %s3
  %s6 = scalar_select 0, %s5, %s3
  $region1: #{tpu_custom_call.1} parent=0
    #allocation2 [shape = 'u8[4096]{0}', space=vmem, size = 0x1000, scoped, tag = 'input window, operand 0, single buffered']
    #allocation3 [shape = 's32[2]{0}', space=sflag, size = 0x8, scoped, tag = 'scoped memory for tpu_custom_call.1']
    #allocation4 [shape = 's32[2]{0}', space=sflag, size = 0x8, scoped, tag = 'scoped memory for tpu_custom_call.1']
    #allocation5 [shape = 'u8[131072]{0}', space=vmem, size = 0x20000, scoped, tag = 'input window, operand 1']
    #allocation6 [shape = 's32[2]{0}', space=sflag, size = 0x8, scoped, tag = 'scoped memory for tpu_custom_call.1']
    #allocation7 [shape = 'u8[8192]{0}', space=vmem, size = 0x2000, scoped, tag = 'output window, operand 0']
    %7 = vsyncpa [#allocation3], 0
    %8 = vsyncpa [#allocation6], 0
    %s9 = scalar_lea.sflag [#allocation6], 1
    %10 = vsyncpa %s9, 0
    %11 = vsyncpa [#allocation4], 0
    %s12 = scalar_lea.sflag [#allocation4], 1
    %13 = vsyncpa %s12, 0
    loop: start=0, step=1, limit=4
    $region2: #{tpu_custom_call.1} parent=1 // loop_pre_header
      _
    $region3: #{tpu_custom_call.1} parent=1 // loop_header
      %s15 = sphi 0, %s19
      %p16 = scmp.ge.s32.totalorder %s15, 4
      %s22 = sphi 0, %s34
      %s23 = sphi 0, %s30
      %s24 = sphi 0, %s22
      %s25 = sphi 0, %s23
      %s26 = sphi 0, %s24
      %s27 = sphi 0, %s25
      %s35 = sphi 0, %s35
      %s37 = sphi 0, %s35
      %s38 = sphi 0, %s37
      %s52 = sphi 0, %s38
      %s60 = sphi 0, %s62
      %s63 = sphi 0, %s60
      %s64 = sphi 0, %s63
      %s80 = sphi 0, %s64
      %s88 = sphi 0, %s90
      %s91 = sphi 0, %s88
      %s92 = sphi 0, %s91
      %s108 = sphi 0, %s92
    $region4: #{tpu_custom_call.1} parent=1 // loop_header_branch
      %18 = sbr.rel (%p16) target = $region8
    $region5: #{tpu_custom_call.1} parent=1 // loop_body
      %s20 = ssub.s32 %s15, 1
      %s21 = ssub.s32 %s15, 2
      %s28 = sadd.s32 1, %s23
      %p29 = scmp.ge.s32.totalorder %s28, 1
      %s30 = scalar_select %p29, 0, %s28
      %s31 = sadd.s32 1, %s22
      %s32 = scalar_select %p29, %s31, %s22
      %p33 = scmp.ge.s32.totalorder %s32, 2
      %s34 = scalar_select %p33, 0, %s32
      %s36 = sadd.s32 %s35, 1
      %p39 = scmp.eq.s32.totalorder %s15, 1
      %p40 = scmp.ne.s32.totalorder %s35, %s37
      %p41 = scmp.eq.s32.totalorder %s15, 0
      %p42 = por %p40, %p41
      %p43 = scmp.ne.s32.totalorder %s35, %s37
      %p44 = scmp.eq.s32.totalorder %s20, 1
      %p45 = por %p43, %p44
      %p46 = scmp.ne.s32.totalorder %s37, %s38
      %p47 = scmp.eq.s32.totalorder %s20, 0
      %p48 = por %p46, %p47
      %p49 = scmp.ne.s32.totalorder %s37, %s38
      %p50 = scmp.eq.s32.totalorder %s21, 1
      %p51 = por %p49, %p50
      %p53 = scmp.ne.s32.totalorder %s38, %s52
      %p54 = scmp.eq.s32.totalorder %s21, 0
      %p55 = por %p53, %p54
      %s56 = ssub.s32 %s22, %s34
      %s57 = ssub.s32 %s23, %s30
      %s58 = sor.u32 %s56, %s57
      %p59 = scmp.eq.s32.totalorder %s58, 0
      %s61 = sadd.s32 %s60, 1
      %s62 = scalar_select %p59, %s60, %s61
      %p65 = pneg %p59
      %p66 = scmp.eq.s32.totalorder %s15, 1
      %p67 = por %p65, %p66
      %p68 = scmp.ne.s32.totalorder %s60, %s63
      %p69 = scmp.eq.s32.totalorder %s15, 0
      %p70 = por %p68, %p69
      %p71 = scmp.ne.s32.totalorder %s60, %s63
      %p72 = scmp.eq.s32.totalorder %s20, 1
      %p73 = por %p71, %p72
      %p74 = scmp.ne.s32.totalorder %s63, %s64
      %p75 = scmp.eq.s32.totalorder %s20, 0
      %p76 = por %p74, %p75
      %p77 = scmp.ne.s32.totalorder %s63, %s64
      %p78 = scmp.eq.s32.totalorder %s21, 1
      %p79 = por %p77, %p78
      %p81 = scmp.ne.s32.totalorder %s64, %s80
      %p82 = scmp.eq.s32.totalorder %s21, 0
      %p83 = por %p81, %p82
      %s84 = ssub.s32 %s22, %s34
      %s85 = ssub.s32 %s23, %s30
      %s86 = sor.u32 %s84, %s85
      %p87 = scmp.eq.s32.totalorder %s86, 0
      %s89 = sadd.s32 %s88, 1
      %s90 = scalar_select %p87, %s88, %s89
      %p93 = pneg %p87
      %p94 = scmp.eq.s32.totalorder %s15, 1
      %p95 = por %p93, %p94
      %p96 = scmp.ne.s32.totalorder %s88, %s91
      %p97 = scmp.eq.s32.totalorder %s15, 0
      %p98 = por %p96, %p97
      %p99 = scmp.ne.s32.totalorder %s88, %s91
      %p100 = scmp.eq.s32.totalorder %s20, 1
      %p101 = por %p99, %p100
      %p102 = scmp.ne.s32.totalorder %s91, %s92
      %p103 = scmp.eq.s32.totalorder %s20, 0
      %p104 = por %p102, %p103
      %p105 = scmp.ne.s32.totalorder %s91, %s92
      %p106 = scmp.eq.s32.totalorder %s21, 1
      %p107 = por %p105, %p106
      %p109 = scmp.ne.s32.totalorder %s92, %s108
      %p110 = scmp.eq.s32.totalorder %s21, 0
      %p111 = por %p109, %p110
      %p112 = scmp.le.s32.totalorder 1, %s15
      %p113 = scmp.lt.s32.totalorder %s15, 3
      %p114 = pnand %p112, %p113
      %p115 = pneg %p114
      // Predicated region
      $region9: #{tpu_custom_call.1} parent=5 // pred_check
        _
      $region10: #{tpu_custom_call.1} parent=5 // pred_check_branch
        %117 = sbr.rel (%p114) target = $region12
      $region11: #{tpu_custom_call.1} parent=5 // pred_region
        %s118 = ssub.s32 %s15, 1
        // Predicated region
        $region13: #{tpu_custom_call.1} parent=11 // pred_check
          %p119 = pneg %p48
        $region14: #{tpu_custom_call.1} parent=11 // pred_check_branch
          %121 = sbr.rel (%p119) target = $region16
        $region15: #{tpu_custom_call.1} parent=11 // pred_region
          %123 = vsyncadd [#allocation3], 0
          %s125 = sshll.u32 %s0, 4
          %s126 = int_to_ptr.hbm [resolvable:$true] %s125
          %s127 = sshll.u32 [#allocation2], 4
          %s128 = int_to_ptr.vmem [resolvable:$true] %s127
          %130 = dma.hbm_to_vmem [thread:$0]  %s126, 128, %s128, [#allocation3]
        $region16: #{tpu_custom_call.1} parent=11 // pred_fallthru
          _
      $region12: #{tpu_custom_call.1} parent=5 // pred_fallthru
        _
      %p131 = scmp.lt.s32.totalorder %s15, 2
      // Predicated region
      $region17: #{tpu_custom_call.1} parent=5 // pred_check
        %p132 = pneg %p131
      $region18: #{tpu_custom_call.1} parent=5 // pred_check_branch
        %134 = sbr.rel (%p132) target = $region20
      $region19: #{tpu_custom_call.1} parent=5 // pred_region
        // Predicated region
        $region21: #{tpu_custom_call.1} parent=19 // pred_check
          %p135 = pneg %p70
        $region22: #{tpu_custom_call.1} parent=19 // pred_check_branch
          %137 = sbr.rel (%p135) target = $region24
        $region23: #{tpu_custom_call.1} parent=19 // pred_region
          %s138 = sand.u32 %s60, 1
          %s139 = scalar_lea.sflag [#allocation6], %s138
          %s140 = sand.u32 %s60, 1
          %s141 = smul.addr %s140, 128
          %s142 = scalar_lea.vmem [#allocation5], %s141
          %s143 = smul.u32 2, %s23
          %145 = vsyncadd %s139, 0
          %s146 = smul.addr %s22, 16
          %s147 = sadd.s32 %s143, %s146
          %s148 = smul.addr %s147, 8
          %s149 = scalar_lea.hbm %s1, %s148
          %s150 = sshll.u32 %s149, 4
          %s151 = int_to_ptr.hbm [resolvable:$true] %s150
          %s152 = sshll.u32 %s142, 4
          %s153 = int_to_ptr.vmem [resolvable:$true] %s152
          %158 = dma.hbm_to_vmem [thread:$0]  %s151, 2048, %s153, %s139, 256, 256, 16
        $region24: #{tpu_custom_call.1} parent=19 // pred_fallthru
          _
      $region20: #{tpu_custom_call.1} parent=5 // pred_fallthru
        _
      %p159 = scmp.le.s32.totalorder 1, %s15
      %p160 = scmp.lt.s32.totalorder %s15, 3
      %p161 = pnand %p159, %p160
      %p162 = pneg %p161
      // Predicated region
      $region25: #{tpu_custom_call.1} parent=5 // pred_check
        _
      $region26: #{tpu_custom_call.1} parent=5 // pred_check_branch
        %164 = sbr.rel (%p161) target = $region28
      $region27: #{tpu_custom_call.1} parent=5 // pred_region
        %s165 = ssub.s32 %s15, 1
        // Predicated region
        $region29: #{tpu_custom_call.1} parent=27 // pred_check
          %p166 = pneg %p48
        $region30: #{tpu_custom_call.1} parent=27 // pred_check_branch
          %168 = sbr.rel (%p166) target = $region32
        $region31: #{tpu_custom_call.1} parent=27 // pred_region
          %170 = dma.done [#allocation3], 128
        $region32: #{tpu_custom_call.1} parent=27 // pred_fallthru
          _
        %s171 = sand.u32 %s63, 1
        %s172 = scalar_lea.sflag [#allocation6], %s171
        %s173 = sand.u32 %s63, 1
        %s174 = smul.addr %s173, 128
        %s175 = scalar_lea.vmem [#allocation5], %s174
        // Predicated region
        $region33: #{tpu_custom_call.1} parent=27 // pred_check
          %p176 = pneg %p76
        $region34: #{tpu_custom_call.1} parent=27 // pred_check_branch
          %178 = sbr.rel (%p176) target = $region36
        $region35: #{tpu_custom_call.1} parent=27 // pred_region
          %180 = dma.done %s172, 2048
        $region36: #{tpu_custom_call.1} parent=27 // pred_fallthru
          _
        %p181 = pneg %p48
        %p182 = pneg %p45
        %s183 = sand.u32 %s63, 1
        %s184 = scalar_lea.sflag [#allocation6], %s183
        %s185 = sand.u32 %s63, 1
        %s186 = smul.addr %s185, 128
        %s187 = scalar_lea.vmem [#allocation5], %s186
        %p188 = pneg %p76
        %p189 = pneg %p73
        %p190 = pneg %p104
        %p191 = pneg %p101
        %s192 = sand.u32 %s91, 1
        %s193 = scalar_lea.sflag [#allocation4], %s192
        %s194 = sand.u32 %s91, 1
        %s195 = smul.addr %s194, 8
        %s196 = scalar_lea.vmem [#allocation7], %s195
        %s197 = smul.u32 2, %s25
        %s198 = smul.u32 2, %s25
        %v200 = vld [vmem:[#allocation2] sm:$0xff]
        %v201 = vpack.c.bf16 %v200, %v200
        %v202 = vld [vmem:[%s175] sm:$0xff]
        %v203 = vld [vmem:[%s175 + $0x8] sm:$0xff]
        %v204 = vld [vmem:[%s175 + $0x10] sm:$0xff]
        %v205 = vld [vmem:[%s175 + $0x18] sm:$0xff]
        %v206 = vld [vmem:[%s175 + $0x20] sm:$0xff]
        %v207 = vld [vmem:[%s175 + $0x28] sm:$0xff]
        %v208 = vld [vmem:[%s175 + $0x30] sm:$0xff]
        %v209 = vld [vmem:[%s175 + $0x38] sm:$0xff]
        %v210 = vld [vmem:[%s175 + $0x40] sm:$0xff]
        %v211 = vld [vmem:[%s175 + $0x48] sm:$0xff]
        %v212 = vld [vmem:[%s175 + $0x50] sm:$0xff]
        %v213 = vld [vmem:[%s175 + $0x58] sm:$0xff]
        %v214 = vld [vmem:[%s175 + $0x60] sm:$0xff]
        %v215 = vld [vmem:[%s175 + $0x68] sm:$0xff]
        %v216 = vld [vmem:[%s175 + $0x70] sm:$0xff]
        %v217 = vld [vmem:[%s175 + $0x78] sm:$0xff]
        %v218 = vpack.c.bf16 %v204, %v202
        %v219 = vpack.c.bf16 %v205, %v203
        %v220 = vpack.c.bf16 %v208, %v206
        %v221 = vpack.c.bf16 %v209, %v207
        %v222 = vpack.c.bf16 %v212, %v210
        %v223 = vpack.c.bf16 %v213, %v211
        %v224 = vpack.c.bf16 %v216, %v214
        %v225 = vpack.c.bf16 %v217, %v215
        %vm226 = vcmask 523264
        %v228 = vsel %vm226, %v201, 0
        %230 = vmatpush.bf16.msra.mxu0 0
        %231 = vmatpush.bf16.msra.mxu0 0
        %232 = vmatpush.bf16.msra.mxu0 0
        %233 = vmatpush.bf16.msra.mxu0 0
        %234 = vmatpush.bf16.msra.mxu0 %v224
        %235 = vmatpush.bf16.msra.mxu0 %v222
        %236 = vmatpush.bf16.msra.mxu0 %v220
        %237 = vmatpush.bf16.msra.mxu0 %v218
        %238 = vmatmul.bf16.gmra.mxu0 %v228
        %v239 = vpop.f32.mrf.mxu0
        %v240 = vadd.f32 0.0, %v239
        %v241 = vpop.f32.mrf.mxu0
        %242 = vdwg.mxu0
        %243 = vmatpush.bf16.msra.mxu0 0
        %244 = vmatpush.bf16.msra.mxu0 0
        %245 = vmatpush.bf16.msra.mxu0 0
        %246 = vmatpush.bf16.msra.mxu0 0
        %247 = vmatpush.bf16.msra.mxu0 %v225
        %248 = vmatpush.bf16.msra.mxu0 %v223
        %249 = vmatpush.bf16.msra.mxu0 %v221
        %250 = vmatpush.bf16.msra.mxu0 %v219
        %251 = vmatmul.bf16.gmra.mxu0 %v228
        %v252 = vpop.f32.mrf.mxu0
        %v253 = vadd.f32 0.0, %v252
        %v254 = vpop.f32.mrf.mxu0
        %255 = vdwg.mxu0
        %v256 = vpack.c.bf16 %v253, %v240
        %257 = vst [vmem:[%s196] sm:$0xff] %v256
        %s258 = sand.u32 %s91, 1
        %s259 = scalar_lea.sflag [#allocation4], %s258
        %s260 = sand.u32 %s91, 1
        %s261 = smul.addr %s260, 8
        %s262 = scalar_lea.vmem [#allocation7], %s261
        // Predicated region
        $region37: #{tpu_custom_call.1} parent=27 // pred_check
          %p263 = pneg %p101
        $region38: #{tpu_custom_call.1} parent=27 // pred_check_branch
          %265 = sbr.rel (%p263) target = $region40
        $region39: #{tpu_custom_call.1} parent=27 // pred_region
          %s266 = smul.u32 2, %s25
          %268 = vsyncadd %s259, 0
          %s269 = smul.addr %s24, 2
          %s270 = sadd.s32 %s266, %s269
          %s271 = smul.addr %s270, 4
          %s272 = scalar_lea.hbm %s2, %s271
          %s274 = sshll.u32 %s262, 4
          %s275 = int_to_ptr.vmem [resolvable:$true] %s274
          %s276 = sshll.u32 %s272, 4
          %s277 = int_to_ptr.hbm [resolvable:$true] %s276
          %279 = dma.vmem_to_hbm [thread:$0]  %s275, 128, %s277, %s259
        $region40: #{tpu_custom_call.1} parent=27 // pred_fallthru
          _
      $region28: #{tpu_custom_call.1} parent=5 // pred_fallthru
        _
      %p280 = scmp.le.s32.totalorder 2, %s15
      // Predicated region
      $region41: #{tpu_custom_call.1} parent=5 // pred_check
        %p281 = pneg %p280
      $region42: #{tpu_custom_call.1} parent=5 // pred_check_branch
        %283 = sbr.rel (%p281) target = $region44
      $region43: #{tpu_custom_call.1} parent=5 // pred_region
        %s284 = ssub.s32 %s15, 2
        // Predicated region
        $region45: #{tpu_custom_call.1} parent=43 // pred_check
          %p285 = pneg %p107
        $region46: #{tpu_custom_call.1} parent=43 // pred_check_branch
          %287 = sbr.rel (%p285) target = $region48
        $region47: #{tpu_custom_call.1} parent=43 // pred_region
          %s288 = sand.u32 %s92, 1
          %s289 = scalar_lea.sflag [#allocation4], %s288
          %s290 = sand.u32 %s92, 1
          %s291 = smul.addr %s290, 8
          %s292 = scalar_lea.vmem [#allocation7], %s291
          %294 = dma.done %s289, 128
        $region48: #{tpu_custom_call.1} parent=43 // pred_fallthru
          _
      $region44: #{tpu_custom_call.1} parent=5 // pred_fallthru
        _
    $region6: #{tpu_custom_call.1} parent=1 // loop_footer
      %s19 = sadd.s32 1, %s15
    $region7: #{tpu_custom_call.1} parent=1 // loop_footer_branch
      %14 = sbr.rel target = $region3
    $region8: #{tpu_custom_call.1} parent=1 // loop_exit
      _
    %295 = vsyncpa [#allocation3], 1
    %s296 = scalar_lea.sflag [#allocation3], 1
    %297 = vsyncpa %s296, 1
    %298 = vsyncpa [#allocation6], 1
    %s299 = scalar_lea.sflag [#allocation6], 1
    %300 = vsyncpa %s299, 1
    %301 = vsyncpa [#allocation4], 1
    %s302 = scalar_lea.sflag [#allocation4], 1
    %303 = vsyncpa %s302, 1

</llo_original>
